<compile_context>
chip_gen: v7x
topology: tpu7x:2x2x1
jax: 0.10.0
libtpu: 0.0.40
codegen_flags: <defaults>
</compile_context>

<pallas_src>
import functools

import jax
import jax.numpy as jnp
from jax.experimental import pallas as pl
from jax.experimental.pallas import tpu as pltpu

GAMMA = 2.0  # module default


def _round_up(x, m):
    return ((x + m - 1) // m) * m


def _vmem_capacity_bytes():
    try:
        return int(pltpu.get_tpu_info().vmem_capacity_bytes)
    except Exception:
        return 64 * 1024 * 1024  # conservative: v7x physical VMEM per core


def _focal_weight(one_minus_p, gamma):
    if gamma == 2.0:          # module default: VPU square, no pow on the EUP
        return one_minus_p * one_minus_p
    if gamma == 1.0:
        return one_minus_p
    if gamma == 0.0:
        return jnp.ones_like(one_minus_p)
    return jnp.power(one_minus_p, gamma)


# ----------------------------------------------------------------------------------
# Packed path: G = 128 // C rows per 128-lane vreg row (C a power of two, 8..128).
# ----------------------------------------------------------------------------------

def _rotate_lanes(x, k, lane_row):
    """y[..., l] = x[..., (l + k) % 128]; robust to pltpu.roll's rotation convention."""
    k = k % 128
    if k == 0:
        return x
    a = pltpu.roll(x, shift=k, axis=1)
    b = pltpu.roll(x, shift=128 - k, axis=1)
    la = pltpu.roll(lane_row, shift=k, axis=1)          # source lane feeding `a` at each lane
    want = jnp.bitwise_and(lane_row + k, 127)
    return jnp.where(la == want, a, b)


def _seg_allreduce(x, combine, seg, lane_row):
    """All-reduce x within aligned lane segments of width `seg` (power of two) via an
    XOR butterfly built from pltpu.roll (robust to the roll direction convention)."""
    s = 1
    while s < seg:
        a = pltpu.roll(x, shift=s, axis=1)
        b = pltpu.roll(x, shift=128 - s, axis=1)
        la = pltpu.roll(lane_row, shift=s, axis=1)       # tiny (1,128) roll, shared mask work
        partner = jnp.bitwise_xor(lane_row, s)           # XOR partner never leaves the segment
        x = combine(x, jnp.where(la == partner, a, b))
        s *= 2
    return x


def _focal_packed_kernel(logits_ref, tlane_ref, out_ref, *, ncls, gamma, chunk, n_chunks):
    # logits_ref: (block_rows, 128) input dtype; G = 128//ncls original rows per vreg row.
    # tlane_ref : (block_rows, G) int32 -- lane index (g*ncls + target) of the target, -1 invalid.
    # out_ref   : (block_rows, G) float32 -- per-row focal loss.
    groups = 128 // ncls
    log2c = ncls.bit_length() - 1
    lane_row = jax.lax.broadcasted_iota(jnp.int32, (1, 128), 1)
    grp_row = jnp.right_shift(lane_row, log2c)

    @pl.loop(0, n_chunks)
    def _(ci):
        r0 = pl.multiple_of(ci * chunk, chunk)
        x = logits_ref[pl.ds(r0, chunk), :].astype(jnp.float32)      # (chunk, 128), lanes dense
        tl = tlane_ref[pl.ds(r0, chunk), :]                          # (chunk, G)

        # Broadcast each group's target-lane index across that group's ncls lanes.
        tb = jnp.full((chunk, 128), -1, jnp.int32)
        for g in range(groups):
            tb = jnp.where(grp_row == g, tl[:, g:g + 1], tb)
        valid = tb >= 0                                              # ignore_index handled here

        # Segmented (per original row) softmax statistics on fully dense lanes.
        m = _seg_allreduce(x, jnp.maximum, ncls, lane_row)
        sh = x - m
        se = _seg_allreduce(jnp.exp(sh), jnp.add, ncls, lane_row)    # the only full-width exp
        xt = _seg_allreduce(jnp.where(lane_row == tb, sh, 0.0), jnp.add, ncls, lane_row)

        log_pt = xt - jnp.log(se)                                    # log_softmax at target
        w = _focal_weight(1.0 - jnp.exp(log_pt), gamma)
        loss = jnp.where(valid, -(w * log_pt), 0.0)                  # replicated across each group

        # Compact: move each group's (replicated) loss from lane g*ncls to lane g.
        out = loss
        for g in range(1, groups):
            y = _rotate_lanes(loss, g * ncls - g, lane_row)
            out = jnp.where(lane_row == g, y, out)
        out_ref[pl.ds(r0, chunk), :] = out[:, :groups].astype(out_ref.dtype)


def _focal_loss_packed(logits, targets, gamma):
    N, C = logits.shape
    G = 128 // C
    M = N // G
    itemsize = logits.dtype.itemsize

    packed = logits.reshape(M, 128)                       # free row-major reshape, no copy pass
    t = targets.astype(jnp.int32)
    valid = (t >= 0) & (t < C)
    lane_of_row = (jnp.arange(N, dtype=jnp.int32) % G) * C
    tlane = jnp.where(valid, lane_of_row + t, -1).reshape(M, G)      # tiny int op on targets only

    # Tile sizing against the *padded* VMEM footprint (logits + lane-padded target/out
    # blocks, all double buffered), generation aware.
    cap = _vmem_capacity_bytes()
    tile_budget = cap // 5
    per_row = 2 * 128 * (itemsize + 4 + 4)
    chunk = 256
    if M <= chunk:
        block_rows, chunk, n_chunks = M, M, 1
    else:
        cap_rows = max(chunk, (tile_budget // per_row) // chunk * chunk)
        half = _round_up(pl.cdiv(M, 2), chunk)            # keep >=2 grid steps for v7x's 2 TCs
        block_rows = min(cap_rows, half)
        n_chunks = block_rows // chunk
    grid_m = pl.cdiv(M, block_rows)                       # ragged last tile handled by Pallas

    est_vmem = block_rows * per_row + 16 * chunk * 128 * 4
    vmem_limit = int(min(cap * 3 // 4, max(est_vmem + (8 << 20), 32 << 20)))

    kernel = functools.partial(_focal_packed_kernel, ncls=C, gamma=float(gamma),
                               chunk=chunk, n_chunks=n_chunks)
    cost = pl.CostEstimate(
        flops=int(10 * N * C + 30 * N),
        transcendentals=int(N * C + 3 * N),
        bytes_accessed=int(N * C * itemsize + 4 * N + 4 * N),
    )
    out = pl.pallas_call(
        kernel,
        out_shape=jax.ShapeDtypeStruct((M, G), jnp.float32),
        grid_spec=pltpu.PrefetchScalarGridSpec(
            num_scalar_prefetch=0,
            grid=(grid_m,),
            in_specs=[
                pl.BlockSpec((block_rows, 128), lambda i: (i, 0)),
                pl.BlockSpec((block_rows, G), lambda i: (i, 0)),
            ],
            out_specs=pl.BlockSpec((block_rows, G), lambda i: (i, 0)),
        ),
        compiler_params=pltpu.CompilerParams(
            dimension_semantics=("parallel",),
            vmem_limit_bytes=vmem_limit,
        ),
        cost_estimate=cost,
    )(packed, tlane)
    return out.reshape(N)


# ----------------------------------------------------------------------------------
# Fallback path: classes on lanes (any C, any N).
# ----------------------------------------------------------------------------------

def _focal_unpacked_kernel(logits_ref, target_ref, out_ref, *, ncls, gamma):
    x = logits_ref[...].astype(jnp.float32)               # (bn, C)
    bn, c = x.shape
    tgt = target_ref[...]                                 # (bn, 1) int32

    m = jnp.max(x, axis=-1, keepdims=True)
    sh = x - m
    se = jnp.sum(jnp.exp(sh), axis=-1, keepdims=True)     # the only full-width exp
    col = jax.lax.broadcasted_iota(jnp.int32, (bn, c), 1)
    xt = jnp.sum(jnp.where(col == tgt, sh, 0.0), axis=-1, keepdims=True)

    log_pt = xt - jnp.log(se)
    w = _focal_weight(1.0 - jnp.exp(log_pt), gamma)
    valid = (tgt >= 0) & (tgt < ncls)                      # in-kernel ignore_index masking
    out_ref[...] = jnp.where(valid, -(w * log_pt), 0.0).astype(out_ref.dtype)


def _focal_loss_unpacked(logits, targets, gamma):
    N, C = logits.shape
    itemsize = logits.dtype.itemsize
    sub = {4: 8, 2: 16, 1: 32}.get(itemsize, 8)            # dtype-aware sublane alignment
    padded_c = _round_up(C, 128)

    cap = _vmem_capacity_bytes()
    tile_budget = cap // 5
    # Double-buffered padded logits + target/out columns, plus ~6 f32 temporaries per row.
    per_row = 2 * (padded_c * itemsize + 512 + 512) + 6 * padded_c * 4
    block_n = max(sub, min(4096, tile_budget // per_row) // sub * sub)
    if N <= 2 * sub:
        block_n = _round_up(N, sub)
    else:
        block_n = min(block_n, _round_up(pl.cdiv(N, 2), sub))   # >=2 grid steps for v7x
    grid_n = pl.cdiv(N, block_n)

    est_vmem = block_n * per_row
    vmem_limit = int(min(cap * 3 // 4, max(est_vmem + (8 << 20), 32 << 20)))

    tgt2d = targets.astype(jnp.int32).reshape(N, 1)
    kernel = functools.partial(_focal_unpacked_kernel, ncls=C, gamma=float(gamma))
    cost = pl.CostEstimate(
        flops=int(8 * N * C + 30 * N),
        transcendentals=int(N * C + 3 * N),
        bytes_accessed=int(N * C * itemsize + 4 * N + 4 * N),
    )
    out = pl.pallas_call(
        kernel,
        out_shape=jax.ShapeDtypeStruct((N, 1), jnp.float32),
        grid_spec=pltpu.PrefetchScalarGridSpec(
            num_scalar_prefetch=0,
            grid=(grid_n,),
            in_specs=[
                pl.BlockSpec((block_n, C), lambda i: (i, 0)),
                pl.BlockSpec((block_n, 1), lambda i: (i, 0)),
            ],
            out_specs=pl.BlockSpec((block_n, 1), lambda i: (i, 0)),
        ),
        compiler_params=pltpu.CompilerParams(
            dimension_semantics=("parallel",),
            vmem_limit_bytes=vmem_limit,
        ),
        cost_estimate=cost,
    )(logits, tgt2d)
    return out[:, 0]


def focal_loss(logits, targets, gamma=GAMMA):
    N, C = logits.shape
    if 8 <= C <= 128 and 128 % C == 0 and N % (128 // C) == 0:
        return _focal_loss_packed(logits, targets, gamma)
    return _focal_loss_unpacked(logits, targets, gamma)


def focal_loss_ref(logits, targets, gamma=GAMMA):
    # Pure-JAX reference mirroring the PyTorch forward (incl. ignore handling).
    C = logits.shape[-1]
    log_prob = jax.nn.log_softmax(logits.astype(jnp.float32), axis=-1)
    prob = jnp.exp(log_prob)
    focal = (1.0 - prob) ** gamma * log_prob
    t = jnp.clip(targets.astype(jnp.int32), 0, C - 1)
    loss = -jnp.take_along_axis(focal, t[:, None], axis=-1)[:, 0]
    valid = (targets >= 0) & (targets < C)
    return jnp.where(valid, loss, 0.0)


if __name__ == "__main__":
    key = jax.random.PRNGKey(0)
    ks = jax.random.split(key, 8)

    # Test 1: small shape consistent with the module (batch=64 logits over 32 classes),
    # exercising the lane-packed path.
    N, C = 64, 32
    logits = jax.random.normal(ks[0], (N, C), dtype=jnp.float32)
    targets = jax.random.randint(ks[1], (N,), 0, C, dtype=jnp.int32)
    out = focal_loss(logits, targets)
    jax.block_until_ready(out)
    ref = focal_loss_ref(logits, targets)
    assert out.shape == (N,)
    assert jnp.allclose(out, ref, atol=1e-5, rtol=1e-5)

    # Test 2: multi-tile packed path (in-kernel chunk loop, ragged last grid step) with
    # ignore_index (-100) targets.
    N2, C2 = 12000, 32
    logits2 = jax.random.normal(ks[2], (N2, C2), dtype=jnp.float32)
    targets2 = jax.random.randint(ks[3], (N2,), 0, C2, dtype=jnp.int32)
    targets2 = targets2.at[::97].set(-100)
    out2 = focal_loss(logits2, targets2)
    jax.block_until_ready(out2)
    ref2 = focal_loss_ref(logits2, targets2)
    assert out2.shape == (N2,)
    assert jnp.allclose(out2, ref2, atol=1e-5, rtol=1e-5)

    # Test 3: bf16 logits on the packed path (dtype stays bf16 over the DMA, f32 math
    # in-register).
    N3, C3 = 128, 32
    logits3 = jax.random.normal(ks[4], (N3, C3), dtype=jnp.float32).astype(jnp.bfloat16)
    targets3 = jax.random.randint(ks[5], (N3,), 0, C3, dtype=jnp.int32)
    out3 = focal_loss(logits3, targets3)
    jax.block_until_ready(out3)
    ref3 = focal_loss_ref(logits3.astype(jnp.float32), targets3)
    assert jnp.allclose(out3, ref3, atol=2e-5, rtol=2e-5)

    # Test 4: fallback path (C does not divide 128) with an out-of-range target.
    N4, C4 = 50, 10
    logits4 = jax.random.normal(ks[6], (N4, C4), dtype=jnp.float32)
    targets4 = jax.random.randint(ks[7], (N4,), 0, C4, dtype=jnp.int32)
    targets4 = targets4.at[3].set(-100)
    out4 = focal_loss(logits4, targets4)
    jax.block_until_ready(out4)
    ref4 = focal_loss_ref(logits4, targets4)
    assert jnp.allclose(out4, ref4, atol=1e-5, rtol=1e-5)

    print("KERNEL_OK")
</pallas_src>

<mosaic_0001>
module attributes {stable_mosaic.version = 11 : i64} {
  func.func @_focal_packed_kernel(%arg0: i32, %arg1: memref<16x128xf32, #tpu.memory_space<vmem>>, %arg2: memref<16x4xi32, #tpu.memory_space<vmem>>, %arg3: memref<16x4xf32, #tpu.memory_space<vmem>>) attributes {dimension_semantics = [#tpu.dimension_semantics<parallel>], iteration_bounds = array<i64: 1>, scalar_prefetch = 0 : i64, scratch_operands = 0 : i64, tpu.core_type = #tpu.core_type<tc>, window_params = [{transform_indices = @transform_0, window_bounds = array<i64: 16, 128>}, {transform_indices = @transform_1, window_bounds = array<i64: 16, 4>}, {transform_indices = @transform_2, window_bounds = array<i64: 16, 4>}]} {
    %0 = tpu.iota {dimensions = array<i32: 1>} : vector<1x128xi32>
    %c5_i32 = arith.constant 5 : i32
    %1 = vector.broadcast %c5_i32 : i32 to vector<1x128xi32>
    %2 = arith.shrsi %0, %1 : vector<1x128xi32>
    %c0_i32 = arith.constant 0 : i32
    %c1_i32 = arith.constant 1 : i32
    %3 = arith.muli %c0_i32, %c1_i32 : i32
    %c0_i32_0 = arith.constant 0 : i32
    %4 = arith.addi %c0_i32_0, %3 : i32
    %c16_i32 = arith.constant 16 : i32
    %5 = arith.muli %4, %c16_i32 : i32
    %6 = tpu.assume_multiple %5, 16 : i32
    %7 = arith.index_cast %6 : i32 to index
    %c0 = arith.constant 0 : index
    %8 = vector.load %arg1[%7, %c0] : memref<16x128xf32, #tpu.memory_space<vmem>>, vector<16x128xf32>
    %9 = arith.index_cast %6 : i32 to index
    %c0_1 = arith.constant 0 : index
    %10 = vector.load %arg2[%9, %c0_1] : memref<16x4xi32, #tpu.memory_space<vmem>>, vector<16x4xi32>
    %c-1_i32 = arith.constant -1 : i32
    %11 = vector.broadcast %c-1_i32 : i32 to vector<16x128xi32>
    %c0_i32_2 = arith.constant 0 : i32
    %12 = vector.broadcast %c0_i32_2 : i32 to vector<1x128xi32>
    %13 = arith.cmpi eq, %2, %12 : vector<1x128xi32>
    %14 = vector.extract_strided_slice %10 {offsets = [0, 0], sizes = [16, 1], strides = [1, 1]} : vector<16x4xi32> to vector<16x1xi32>
    %15 = vector.shape_cast %13 : vector<1x128xi1> to vector<1x128xi1>
    %16 = vector.broadcast %15 : vector<1x128xi1> to vector<16x128xi1>
    %17 = vector.shape_cast %14 : vector<16x1xi32> to vector<16x1xi32>
    %18 = vector.broadcast %17 : vector<16x1xi32> to vector<16x128xi32>
    %19 = arith.select %16, %18, %11 : vector<16x128xi1>, vector<16x128xi32>
    %c1_i32_3 = arith.constant 1 : i32
    %20 = vector.broadcast %c1_i32_3 : i32 to vector<1x128xi32>
    %21 = arith.cmpi eq, %2, %20 : vector<1x128xi32>
    %22 = vector.extract_strided_slice %10 {offsets = [0, 1], sizes = [16, 1], strides = [1, 1]} : vector<16x4xi32> to vector<16x1xi32>
    %23 = vector.shape_cast %21 : vector<1x128xi1> to vector<1x128xi1>
    %24 = vector.broadcast %23 : vector<1x128xi1> to vector<16x128xi1>
    %25 = vector.shape_cast %22 : vector<16x1xi32> to vector<16x1xi32>
    %26 = vector.broadcast %25 : vector<16x1xi32> to vector<16x128xi32>
    %27 = arith.select %24, %26, %19 : vector<16x128xi1>, vector<16x128xi32>
    %c2_i32 = arith.constant 2 : i32
    %28 = vector.broadcast %c2_i32 : i32 to vector<1x128xi32>
    %29 = arith.cmpi eq, %2, %28 : vector<1x128xi32>
    %30 = vector.extract_strided_slice %10 {offsets = [0, 2], sizes = [16, 1], strides = [1, 1]} : vector<16x4xi32> to vector<16x1xi32>
    %31 = vector.shape_cast %29 : vector<1x128xi1> to vector<1x128xi1>
    %32 = vector.broadcast %31 : vector<1x128xi1> to vector<16x128xi1>
    %33 = vector.shape_cast %30 : vector<16x1xi32> to vector<16x1xi32>
    %34 = vector.broadcast %33 : vector<16x1xi32> to vector<16x128xi32>
    %35 = arith.select %32, %34, %27 : vector<16x128xi1>, vector<16x128xi32>
    %c3_i32 = arith.constant 3 : i32
    %36 = vector.broadcast %c3_i32 : i32 to vector<1x128xi32>
    %37 = arith.cmpi eq, %2, %36 : vector<1x128xi32>
    %38 = vector.extract_strided_slice %10 {offsets = [0, 3], sizes = [16, 1], strides = [1, 1]} : vector<16x4xi32> to vector<16x1xi32>
    %39 = vector.shape_cast %37 : vector<1x128xi1> to vector<1x128xi1>
    %40 = vector.broadcast %39 : vector<1x128xi1> to vector<16x128xi1>
    %41 = vector.shape_cast %38 : vector<16x1xi32> to vector<16x1xi32>
    %42 = vector.broadcast %41 : vector<16x1xi32> to vector<16x128xi32>
    %43 = arith.select %40, %42, %35 : vector<16x128xi1>, vector<16x128xi32>
    %c0_i32_4 = arith.constant 0 : i32
    %44 = vector.broadcast %c0_i32_4 : i32 to vector<16x128xi32>
    %45 = arith.cmpi sge, %43, %44 : vector<16x128xi32>
    %c1_i32_5 = arith.constant 1 : i32
    %46 = tpu.dynamic_rotate %8 by %c1_i32_5 dim 1 : vector<16x128xf32>, i32 -> vector<16x128xf32>
    %c127_i32 = arith.constant 127 : i32
    %47 = tpu.dynamic_rotate %8 by %c127_i32 dim 1 : vector<16x128xf32>, i32 -> vector<16x128xf32>
    %c1_i32_6 = arith.constant 1 : i32
    %48 = tpu.dynamic_rotate %0 by %c1_i32_6 dim 1 : vector<1x128xi32>, i32 -> vector<1x128xi32>
    %c1_i32_7 = arith.constant 1 : i32
    %49 = vector.broadcast %c1_i32_7 : i32 to vector<1x128xi32>
    %50 = arith.xori %0, %49 : vector<1x128xi32>
    %51 = arith.cmpi eq, %48, %50 : vector<1x128xi32>
    %52 = vector.shape_cast %51 : vector<1x128xi1> to vector<1x128xi1>
    %53 = vector.broadcast %52 : vector<1x128xi1> to vector<16x128xi1>
    %54 = arith.select %53, %46, %47 : vector<16x128xi1>, vector<16x128xf32>
    %55 = arith.maximumf %8, %54 : vector<16x128xf32>
    %c2_i32_8 = arith.constant 2 : i32
    %56 = tpu.dynamic_rotate %55 by %c2_i32_8 dim 1 : vector<16x128xf32>, i32 -> vector<16x128xf32>
    %c126_i32 = arith.constant 126 : i32
    %57 = tpu.dynamic_rotate %55 by %c126_i32 dim 1 : vector<16x128xf32>, i32 -> vector<16x128xf32>
    %c2_i32_9 = arith.constant 2 : i32
    %58 = tpu.dynamic_rotate %0 by %c2_i32_9 dim 1 : vector<1x128xi32>, i32 -> vector<1x128xi32>
    %c2_i32_10 = arith.constant 2 : i32
    %59 = vector.broadcast %c2_i32_10 : i32 to vector<1x128xi32>
    %60 = arith.xori %0, %59 : vector<1x128xi32>
    %61 = arith.cmpi eq, %58, %60 : vector<1x128xi32>
    %62 = vector.shape_cast %61 : vector<1x128xi1> to vector<1x128xi1>
    %63 = vector.broadcast %62 : vector<1x128xi1> to vector<16x128xi1>
    %64 = arith.select %63, %56, %57 : vector<16x128xi1>, vector<16x128xf32>
    %65 = arith.maximumf %55, %64 : vector<16x128xf32>
    %c4_i32 = arith.constant 4 : i32
    %66 = tpu.dynamic_rotate %65 by %c4_i32 dim 1 : vector<16x128xf32>, i32 -> vector<16x128xf32>
    %c124_i32 = arith.constant 124 : i32
    %67 = tpu.dynamic_rotate %65 by %c124_i32 dim 1 : vector<16x128xf32>, i32 -> vector<16x128xf32>
    %c4_i32_11 = arith.constant 4 : i32
    %68 = tpu.dynamic_rotate %0 by %c4_i32_11 dim 1 : vector<1x128xi32>, i32 -> vector<1x128xi32>
    %c4_i32_12 = arith.constant 4 : i32
    %69 = vector.broadcast %c4_i32_12 : i32 to vector<1x128xi32>
    %70 = arith.xori %0, %69 : vector<1x128xi32>
    %71 = arith.cmpi eq, %68, %70 : vector<1x128xi32>
    %72 = vector.shape_cast %71 : vector<1x128xi1> to vector<1x128xi1>
    %73 = vector.broadcast %72 : vector<1x128xi1> to vector<16x128xi1>
    %74 = arith.select %73, %66, %67 : vector<16x128xi1>, vector<16x128xf32>
    %75 = arith.maximumf %65, %74 : vector<16x128xf32>
    %c8_i32 = arith.constant 8 : i32
    %76 = tpu.dynamic_rotate %75 by %c8_i32 dim 1 : vector<16x128xf32>, i32 -> vector<16x128xf32>
    %c120_i32 = arith.constant 120 : i32
    %77 = tpu.dynamic_rotate %75 by %c120_i32 dim 1 : vector<16x128xf32>, i32 -> vector<16x128xf32>
    %c8_i32_13 = arith.constant 8 : i32
    %78 = tpu.dynamic_rotate %0 by %c8_i32_13 dim 1 : vector<1x128xi32>, i32 -> vector<1x128xi32>
    %c8_i32_14 = arith.constant 8 : i32
    %79 = vector.broadcast %c8_i32_14 : i32 to vector<1x128xi32>
    %80 = arith.xori %0, %79 : vector<1x128xi32>
    %81 = arith.cmpi eq, %78, %80 : vector<1x128xi32>
    %82 = vector.shape_cast %81 : vector<1x128xi1> to vector<1x128xi1>
    %83 = vector.broadcast %82 : vector<1x128xi1> to vector<16x128xi1>
    %84 = arith.select %83, %76, %77 : vector<16x128xi1>, vector<16x128xf32>
    %85 = arith.maximumf %75, %84 : vector<16x128xf32>
    %c16_i32_15 = arith.constant 16 : i32
    %86 = tpu.dynamic_rotate %85 by %c16_i32_15 dim 1 : vector<16x128xf32>, i32 -> vector<16x128xf32>
    %c112_i32 = arith.constant 112 : i32
    %87 = tpu.dynamic_rotate %85 by %c112_i32 dim 1 : vector<16x128xf32>, i32 -> vector<16x128xf32>
    %c16_i32_16 = arith.constant 16 : i32
    %88 = tpu.dynamic_rotate %0 by %c16_i32_16 dim 1 : vector<1x128xi32>, i32 -> vector<1x128xi32>
    %c16_i32_17 = arith.constant 16 : i32
    %89 = vector.broadcast %c16_i32_17 : i32 to vector<1x128xi32>
    %90 = arith.xori %0, %89 : vector<1x128xi32>
    %91 = arith.cmpi eq, %88, %90 : vector<1x128xi32>
    %92 = vector.shape_cast %91 : vector<1x128xi1> to vector<1x128xi1>
    %93 = vector.broadcast %92 : vector<1x128xi1> to vector<16x128xi1>
    %94 = arith.select %93, %86, %87 : vector<16x128xi1>, vector<16x128xf32>
    %95 = arith.maximumf %85, %94 : vector<16x128xf32>
    %96 = arith.subf %8, %95 : vector<16x128xf32>
    %97 = math.exp %96 : vector<16x128xf32>
    %c1_i32_18 = arith.constant 1 : i32
    %98 = tpu.dynamic_rotate %97 by %c1_i32_18 dim 1 : vector<16x128xf32>, i32 -> vector<16x128xf32>
    %c127_i32_19 = arith.constant 127 : i32
    %99 = tpu.dynamic_rotate %97 by %c127_i32_19 dim 1 : vector<16x128xf32>, i32 -> vector<16x128xf32>
    %c1_i32_20 = arith.constant 1 : i32
    %100 = tpu.dynamic_rotate %0 by %c1_i32_20 dim 1 : vector<1x128xi32>, i32 -> vector<1x128xi32>
    %c1_i32_21 = arith.constant 1 : i32
    %101 = vector.broadcast %c1_i32_21 : i32 to vector<1x128xi32>
    %102 = arith.xori %0, %101 : vector<1x128xi32>
    %103 = arith.cmpi eq, %100, %102 : vector<1x128xi32>
    %104 = vector.shape_cast %103 : vector<1x128xi1> to vector<1x128xi1>
    %105 = vector.broadcast %104 : vector<1x128xi1> to vector<16x128xi1>
    %106 = arith.select %105, %98, %99 : vector<16x128xi1>, vector<16x128xf32>
    %107 = arith.addf %97, %106 : vector<16x128xf32>
    %c2_i32_22 = arith.constant 2 : i32
    %108 = tpu.dynamic_rotate %107 by %c2_i32_22 dim 1 : vector<16x128xf32>, i32 -> vector<16x128xf32>
    %c126_i32_23 = arith.constant 126 : i32
    %109 = tpu.dynamic_rotate %107 by %c126_i32_23 dim 1 : vector<16x128xf32>, i32 -> vector<16x128xf32>
    %c2_i32_24 = arith.constant 2 : i32
    %110 = tpu.dynamic_rotate %0 by %c2_i32_24 dim 1 : vector<1x128xi32>, i32 -> vector<1x128xi32>
    %c2_i32_25 = arith.constant 2 : i32
    %111 = vector.broadcast %c2_i32_25 : i32 to vector<1x128xi32>
    %112 = arith.xori %0, %111 : vector<1x128xi32>
    %113 = arith.cmpi eq, %110, %112 : vector<1x128xi32>
    %114 = vector.shape_cast %113 : vector<1x128xi1> to vector<1x128xi1>
    %115 = vector.broadcast %114 : vector<1x128xi1> to vector<16x128xi1>
    %116 = arith.select %115, %108, %109 : vector<16x128xi1>, vector<16x128xf32>
    %117 = arith.addf %107, %116 : vector<16x128xf32>
    %c4_i32_26 = arith.constant 4 : i32
    %118 = tpu.dynamic_rotate %117 by %c4_i32_26 dim 1 : vector<16x128xf32>, i32 -> vector<16x128xf32>
    %c124_i32_27 = arith.constant 124 : i32
    %119 = tpu.dynamic_rotate %117 by %c124_i32_27 dim 1 : vector<16x128xf32>, i32 -> vector<16x128xf32>
    %c4_i32_28 = arith.constant 4 : i32
    %120 = tpu.dynamic_rotate %0 by %c4_i32_28 dim 1 : vector<1x128xi32>, i32 -> vector<1x128xi32>
    %c4_i32_29 = arith.constant 4 : i32
    %121 = vector.broadcast %c4_i32_29 : i32 to vector<1x128xi32>
    %122 = arith.xori %0, %121 : vector<1x128xi32>
    %123 = arith.cmpi eq, %120, %122 : vector<1x128xi32>
    %124 = vector.shape_cast %123 : vector<1x128xi1> to vector<1x128xi1>
    %125 = vector.broadcast %124 : vector<1x128xi1> to vector<16x128xi1>
    %126 = arith.select %125, %118, %119 : vector<16x128xi1>, vector<16x128xf32>
    %127 = arith.addf %117, %126 : vector<16x128xf32>
    %c8_i32_30 = arith.constant 8 : i32
    %128 = tpu.dynamic_rotate %127 by %c8_i32_30 dim 1 : vector<16x128xf32>, i32 -> vector<16x128xf32>
    %c120_i32_31 = arith.constant 120 : i32
    %129 = tpu.dynamic_rotate %127 by %c120_i32_31 dim 1 : vector<16x128xf32>, i32 -> vector<16x128xf32>
    %c8_i32_32 = arith.constant 8 : i32
    %130 = tpu.dynamic_rotate %0 by %c8_i32_32 dim 1 : vector<1x128xi32>, i32 -> vector<1x128xi32>
    %c8_i32_33 = arith.constant 8 : i32
    %131 = vector.broadcast %c8_i32_33 : i32 to vector<1x128xi32>
    %132 = arith.xori %0, %131 : vector<1x128xi32>
    %133 = arith.cmpi eq, %130, %132 : vector<1x128xi32>
    %134 = vector.shape_cast %133 : vector<1x128xi1> to vector<1x128xi1>
    %135 = vector.broadcast %134 : vector<1x128xi1> to vector<16x128xi1>
    %136 = arith.select %135, %128, %129 : vector<16x128xi1>, vector<16x128xf32>
    %137 = arith.addf %127, %136 : vector<16x128xf32>
    %c16_i32_34 = arith.constant 16 : i32
    %138 = tpu.dynamic_rotate %137 by %c16_i32_34 dim 1 : vector<16x128xf32>, i32 -> vector<16x128xf32>
    %c112_i32_35 = arith.constant 112 : i32
    %139 = tpu.dynamic_rotate %137 by %c112_i32_35 dim 1 : vector<16x128xf32>, i32 -> vector<16x128xf32>
    %c16_i32_36 = arith.constant 16 : i32
    %140 = tpu.dynamic_rotate %0 by %c16_i32_36 dim 1 : vector<1x128xi32>, i32 -> vector<1x128xi32>
    %c16_i32_37 = arith.constant 16 : i32
    %141 = vector.broadcast %c16_i32_37 : i32 to vector<1x128xi32>
    %142 = arith.xori %0, %141 : vector<1x128xi32>
    %143 = arith.cmpi eq, %140, %142 : vector<1x128xi32>
    %144 = vector.shape_cast %143 : vector<1x128xi1> to vector<1x128xi1>
    %145 = vector.broadcast %144 : vector<1x128xi1> to vector<16x128xi1>
    %146 = arith.select %145, %138, %139 : vector<16x128xi1>, vector<16x128xf32>
    %147 = arith.addf %137, %146 : vector<16x128xf32>
    %148 = vector.broadcast %0 : vector<1x128xi32> to vector<16x128xi32>
    %149 = arith.cmpi eq, %148, %43 : vector<16x128xi32>
    %cst = arith.constant 0.000000e+00 : f32
    %150 = vector.broadcast %cst : f32 to vector<16x128xf32>
    %151 = arith.select %149, %96, %150 : vector<16x128xi1>, vector<16x128xf32>
    %c1_i32_38 = arith.constant 1 : i32
    %152 = tpu.dynamic_rotate %151 by %c1_i32_38 dim 1 : vector<16x128xf32>, i32 -> vector<16x128xf32>
    %c127_i32_39 = arith.constant 127 : i32
    %153 = tpu.dynamic_rotate %151 by %c127_i32_39 dim 1 : vector<16x128xf32>, i32 -> vector<16x128xf32>
    %c1_i32_40 = arith.constant 1 : i32
    %154 = tpu.dynamic_rotate %0 by %c1_i32_40 dim 1 : vector<1x128xi32>, i32 -> vector<1x128xi32>
    %c1_i32_41 = arith.constant 1 : i32
    %155 = vector.broadcast %c1_i32_41 : i32 to vector<1x128xi32>
    %156 = arith.xori %0, %155 : vector<1x128xi32>
    %157 = arith.cmpi eq, %154, %156 : vector<1x128xi32>
    %158 = vector.shape_cast %157 : vector<1x128xi1> to vector<1x128xi1>
    %159 = vector.broadcast %158 : vector<1x128xi1> to vector<16x128xi1>
    %160 = arith.select %159, %152, %153 : vector<16x128xi1>, vector<16x128xf32>
    %161 = arith.addf %151, %160 : vector<16x128xf32>
    %c2_i32_42 = arith.constant 2 : i32
    %162 = tpu.dynamic_rotate %161 by %c2_i32_42 dim 1 : vector<16x128xf32>, i32 -> vector<16x128xf32>
    %c126_i32_43 = arith.constant 126 : i32
    %163 = tpu.dynamic_rotate %161 by %c126_i32_43 dim 1 : vector<16x128xf32>, i32 -> vector<16x128xf32>
    %c2_i32_44 = arith.constant 2 : i32
    %164 = tpu.dynamic_rotate %0 by %c2_i32_44 dim 1 : vector<1x128xi32>, i32 -> vector<1x128xi32>
    %c2_i32_45 = arith.constant 2 : i32
    %165 = vector.broadcast %c2_i32_45 : i32 to vector<1x128xi32>
    %166 = arith.xori %0, %165 : vector<1x128xi32>
    %167 = arith.cmpi eq, %164, %166 : vector<1x128xi32>
    %168 = vector.shape_cast %167 : vector<1x128xi1> to vector<1x128xi1>
    %169 = vector.broadcast %168 : vector<1x128xi1> to vector<16x128xi1>
    %170 = arith.select %169, %162, %163 : vector<16x128xi1>, vector<16x128xf32>
    %171 = arith.addf %161, %170 : vector<16x128xf32>
    %c4_i32_46 = arith.constant 4 : i32
    %172 = tpu.dynamic_rotate %171 by %c4_i32_46 dim 1 : vector<16x128xf32>, i32 -> vector<16x128xf32>
    %c124_i32_47 = arith.constant 124 : i32
    %173 = tpu.dynamic_rotate %171 by %c124_i32_47 dim 1 : vector<16x128xf32>, i32 -> vector<16x128xf32>
    %c4_i32_48 = arith.constant 4 : i32
    %174 = tpu.dynamic_rotate %0 by %c4_i32_48 dim 1 : vector<1x128xi32>, i32 -> vector<1x128xi32>
    %c4_i32_49 = arith.constant 4 : i32
    %175 = vector.broadcast %c4_i32_49 : i32 to vector<1x128xi32>
    %176 = arith.xori %0, %175 : vector<1x128xi32>
    %177 = arith.cmpi eq, %174, %176 : vector<1x128xi32>
    %178 = vector.shape_cast %177 : vector<1x128xi1> to vector<1x128xi1>
    %179 = vector.broadcast %178 : vector<1x128xi1> to vector<16x128xi1>
    %180 = arith.select %179, %172, %173 : vector<16x128xi1>, vector<16x128xf32>
    %181 = arith.addf %171, %180 : vector<16x128xf32>
    %c8_i32_50 = arith.constant 8 : i32
    %182 = tpu.dynamic_rotate %181 by %c8_i32_50 dim 1 : vector<16x128xf32>, i32 -> vector<16x128xf32>
    %c120_i32_51 = arith.constant 120 : i32
    %183 = tpu.dynamic_rotate %181 by %c120_i32_51 dim 1 : vector<16x128xf32>, i32 -> vector<16x128xf32>
    %c8_i32_52 = arith.constant 8 : i32
    %184 = tpu.dynamic_rotate %0 by %c8_i32_52 dim 1 : vector<1x128xi32>, i32 -> vector<1x128xi32>
    %c8_i32_53 = arith.constant 8 : i32
    %185 = vector.broadcast %c8_i32_53 : i32 to vector<1x128xi32>
    %186 = arith.xori %0, %185 : vector<1x128xi32>
    %187 = arith.cmpi eq, %184, %186 : vector<1x128xi32>
    %188 = vector.shape_cast %187 : vector<1x128xi1> to vector<1x128xi1>
    %189 = vector.broadcast %188 : vector<1x128xi1> to vector<16x128xi1>
    %190 = arith.select %189, %182, %183 : vector<16x128xi1>, vector<16x128xf32>
    %191 = arith.addf %181, %190 : vector<16x128xf32>
    %c16_i32_54 = arith.constant 16 : i32
    %192 = tpu.dynamic_rotate %191 by %c16_i32_54 dim 1 : vector<16x128xf32>, i32 -> vector<16x128xf32>
    %c112_i32_55 = arith.constant 112 : i32
    %193 = tpu.dynamic_rotate %191 by %c112_i32_55 dim 1 : vector<16x128xf32>, i32 -> vector<16x128xf32>
    %c16_i32_56 = arith.constant 16 : i32
    %194 = tpu.dynamic_rotate %0 by %c16_i32_56 dim 1 : vector<1x128xi32>, i32 -> vector<1x128xi32>
    %c16_i32_57 = arith.constant 16 : i32
    %195 = vector.broadcast %c16_i32_57 : i32 to vector<1x128xi32>
    %196 = arith.xori %0, %195 : vector<1x128xi32>
    %197 = arith.cmpi eq, %194, %196 : vector<1x128xi32>
    %198 = vector.shape_cast %197 : vector<1x128xi1> to vector<1x128xi1>
    %199 = vector.broadcast %198 : vector<1x128xi1> to vector<16x128xi1>
    %200 = arith.select %199, %192, %193 : vector<16x128xi1>, vector<16x128xf32>
    %201 = arith.addf %191, %200 : vector<16x128xf32>
    %202 = math.log %147 : vector<16x128xf32>
    %203 = arith.subf %201, %202 : vector<16x128xf32>
    %204 = math.exp %203 : vector<16x128xf32>
    %cst_58 = arith.constant 1.000000e+00 : f32
    %205 = vector.broadcast %cst_58 : f32 to vector<16x128xf32>
    %206 = arith.subf %205, %204 : vector<16x128xf32>
    %207 = arith.mulf %206, %206 : vector<16x128xf32>
    %208 = arith.mulf %207, %203 : vector<16x128xf32>
    %cst_59 = arith.constant 0.000000e+00 : f32
    %209 = vector.broadcast %cst_59 : f32 to vector<16x128xf32>
    %210 = arith.subf %209, %208 : vector<16x128xf32>
    %cst_60 = arith.constant 0.000000e+00 : f32
    %211 = vector.broadcast %cst_60 : f32 to vector<16x128xf32>
    %212 = arith.select %45, %210, %211 : vector<16x128xi1>, vector<16x128xf32>
    %c31_i32 = arith.constant 31 : i32
    %213 = tpu.dynamic_rotate %212 by %c31_i32 dim 1 : vector<16x128xf32>, i32 -> vector<16x128xf32>
    %c97_i32 = arith.constant 97 : i32
    %214 = tpu.dynamic_rotate %212 by %c97_i32 dim 1 : vector<16x128xf32>, i32 -> vector<16x128xf32>
    %c31_i32_61 = arith.constant 31 : i32
    %215 = tpu.dynamic_rotate %0 by %c31_i32_61 dim 1 : vector<1x128xi32>, i32 -> vector<1x128xi32>
    %c31_i32_62 = arith.constant 31 : i32
    %216 = vector.broadcast %c31_i32_62 : i32 to vector<1x128xi32>
    %217 = arith.addi %0, %216 : vector<1x128xi32>
    %c127_i32_63 = arith.constant 127 : i32
    %218 = vector.broadcast %c127_i32_63 : i32 to vector<1x128xi32>
    %219 = arith.andi %217, %218 : vector<1x128xi32>
    %220 = arith.cmpi eq, %215, %219 : vector<1x128xi32>
    %221 = vector.shape_cast %220 : vector<1x128xi1> to vector<1x128xi1>
    %222 = vector.broadcast %221 : vector<1x128xi1> to vector<16x128xi1>
    %223 = arith.select %222, %213, %214 : vector<16x128xi1>, vector<16x128xf32>
    %c1_i32_64 = arith.constant 1 : i32
    %224 = vector.broadcast %c1_i32_64 : i32 to vector<1x128xi32>
    %225 = arith.cmpi eq, %0, %224 : vector<1x128xi32>
    %226 = vector.shape_cast %225 : vector<1x128xi1> to vector<1x128xi1>
    %227 = vector.broadcast %226 : vector<1x128xi1> to vector<16x128xi1>
    %228 = arith.select %227, %223, %212 : vector<16x128xi1>, vector<16x128xf32>
    %c62_i32 = arith.constant 62 : i32
    %229 = tpu.dynamic_rotate %212 by %c62_i32 dim 1 : vector<16x128xf32>, i32 -> vector<16x128xf32>
    %c66_i32 = arith.constant 66 : i32
    %230 = tpu.dynamic_rotate %212 by %c66_i32 dim 1 : vector<16x128xf32>, i32 -> vector<16x128xf32>
    %c62_i32_65 = arith.constant 62 : i32
    %231 = tpu.dynamic_rotate %0 by %c62_i32_65 dim 1 : vector<1x128xi32>, i32 -> vector<1x128xi32>
    %c62_i32_66 = arith.constant 62 : i32
    %232 = vector.broadcast %c62_i32_66 : i32 to vector<1x128xi32>
    %233 = arith.addi %0, %232 : vector<1x128xi32>
    %c127_i32_67 = arith.constant 127 : i32
    %234 = vector.broadcast %c127_i32_67 : i32 to vector<1x128xi32>
    %235 = arith.andi %233, %234 : vector<1x128xi32>
    %236 = arith.cmpi eq, %231, %235 : vector<1x128xi32>
    %237 = vector.shape_cast %236 : vector<1x128xi1> to vector<1x128xi1>
    %238 = vector.broadcast %237 : vector<1x128xi1> to vector<16x128xi1>
    %239 = arith.select %238, %229, %230 : vector<16x128xi1>, vector<16x128xf32>
    %c2_i32_68 = arith.constant 2 : i32
    %240 = vector.broadcast %c2_i32_68 : i32 to vector<1x128xi32>
    %241 = arith.cmpi eq, %0, %240 : vector<1x128xi32>
    %242 = vector.shape_cast %241 : vector<1x128xi1> to vector<1x128xi1>
    %243 = vector.broadcast %242 : vector<1x128xi1> to vector<16x128xi1>
    %244 = arith.select %243, %239, %228 : vector<16x128xi1>, vector<16x128xf32>
    %c93_i32 = arith.constant 93 : i32
    %245 = tpu.dynamic_rotate %212 by %c93_i32 dim 1 : vector<16x128xf32>, i32 -> vector<16x128xf32>
    %c35_i32 = arith.constant 35 : i32
    %246 = tpu.dynamic_rotate %212 by %c35_i32 dim 1 : vector<16x128xf32>, i32 -> vector<16x128xf32>
    %c93_i32_69 = arith.constant 93 : i32
    %247 = tpu.dynamic_rotate %0 by %c93_i32_69 dim 1 : vector<1x128xi32>, i32 -> vector<1x128xi32>
    %c93_i32_70 = arith.constant 93 : i32
    %248 = vector.broadcast %c93_i32_70 : i32 to vector<1x128xi32>
    %249 = arith.addi %0, %248 : vector<1x128xi32>
    %c127_i32_71 = arith.constant 127 : i32
    %250 = vector.broadcast %c127_i32_71 : i32 to vector<1x128xi32>
    %251 = arith.andi %249, %250 : vector<1x128xi32>
    %252 = arith.cmpi eq, %247, %251 : vector<1x128xi32>
    %253 = vector.shape_cast %252 : vector<1x128xi1> to vector<1x128xi1>
    %254 = vector.broadcast %253 : vector<1x128xi1> to vector<16x128xi1>
    %255 = arith.select %254, %245, %246 : vector<16x128xi1>, vector<16x128xf32>
    %c3_i32_72 = arith.constant 3 : i32
    %256 = vector.broadcast %c3_i32_72 : i32 to vector<1x128xi32>
    %257 = arith.cmpi eq, %0, %256 : vector<1x128xi32>
    %258 = vector.shape_cast %257 : vector<1x128xi1> to vector<1x128xi1>
    %259 = vector.broadcast %258 : vector<1x128xi1> to vector<16x128xi1>
    %260 = arith.select %259, %255, %244 : vector<16x128xi1>, vector<16x128xf32>
    %261 = vector.extract_strided_slice %260 {offsets = [0, 0], sizes = [16, 4], strides = [1, 1]} : vector<16x128xf32> to vector<16x4xf32>
    %262 = arith.index_cast %6 : i32 to index
    %c0_73 = arith.constant 0 : index
    %263 = vector.load %arg3[%262, %c0_73] : memref<16x4xf32, #tpu.memory_space<vmem>>, vector<16x4xf32>
    tpu.vector_store %arg3[%262, %c0_73], %261 {strides = array<i32>} : memref<16x4xf32, #tpu.memory_space<vmem>>, vector<16x4xf32>,
    %c1_i32_74 = arith.constant 1 : i32
    return
  }
  func.func @transform_0(%arg0: i32) -> (i32, i32) {
    %c0_i32 = arith.constant 0 : i32
    %c0_i32_0 = arith.constant 0 : i32
    return %arg0, %c0_i32 : i32, i32
  }
  func.func @transform_1(%arg0: i32) -> (i32, i32) {
    %c0_i32 = arith.constant 0 : i32
    %c0_i32_0 = arith.constant 0 : i32
    return %arg0, %c0_i32 : i32, i32
  }
  func.func @transform_2(%arg0: i32) -> (i32, i32) {
    %c0_i32 = arith.constant 0 : i32
    %c0_i32_0 = arith.constant 0 : i32
    return %arg0, %c0_i32 : i32, i32
  }
}

</mosaic_0001>

<llo_original>
// kernel: tpu_custom_call.1
$region0: #{tpu_custom_call.1}
  #allocation0 [shape = 'u32[]', space=smem, size = 0x4, offset = 0x4, fixed_abs, tag = 'smem constant byte address 0x4 - core index']
  #allocation1 [shape = 'u32[144,128]{1,0:T(1,128)}', space=vmem, size = 0x12000, scoped, tag = 'internal scratch']
  %s0 = inlined_call_operand.vmem [shape: f32[16,128], index: 0, kind: input, shape index: {}]
  %s1 = inlined_call_operand.vmem [shape: s32[16,4], index: 1, kind: input, shape index: {}]
  %s2 = inlined_call_operand.vmem [shape: f32[16,4], index: 2, kind: output, shape index: {}]
  %s3 = sld [smem:[#allocation0]]
  $region18: #{tpu_custom_call.1} parent=0
    _
  %s5 = ssub.s32 1, %s3
  %s6 = scalar_select 0, %s5, %s3
  // Predicated region
  $region2: #{tpu_custom_call.1} parent=0 // pred_check
    _
  $region3: #{tpu_custom_call.1} parent=0 // pred_check_branch
    %8 = sbr.rel (0) target = $region5
  $region4: #{tpu_custom_call.1} parent=0 // pred_region
    _
  $region5: #{tpu_custom_call.1} parent=0 // pred_fallthru
    _
  // Predicated region
  $region6: #{tpu_custom_call.1} parent=0 // pred_check
    _
  $region7: #{tpu_custom_call.1} parent=0 // pred_check_branch
    %10 = sbr.rel (0) target = $region9
  $region8: #{tpu_custom_call.1} parent=0 // pred_region
    _
  $region9: #{tpu_custom_call.1} parent=0 // pred_fallthru
    _
  %v11 = vlaneseq
  %v12 = vand.u32 %v11, 127
  %v13 = vshra.s32 %v12, 5
  %v14 = vld [vmem:[%s0] sm:$0xff]
  %v15 = vld [vmem:[%s0 + $0x8] sm:$0xff]
  %v16 = vld [vmem:[%s1] sm:$0xff]
  %v17 = vld [vmem:[%s1 + $0x8] sm:$0xff]
  %vm18 = vcmp.eq.s32.totalorder %v13, 0
  %v19 = vsel %vm18, 1, 0
  %vm20 = vcmp.eq.s32.totalorder %v19, 1
  %21 = vset.pattern.permute.xlu0 0
  %22 = vperm.xlu0 %21, %v16
  %v23 = vpop.permute.xlu0 %22
  %24 = vset.pattern.permute.xlu0 0
  %25 = vperm.xlu0 %24, %v17
  %v26 = vpop.permute.xlu0 %25
  %v27 = vsel %vm20, %v23, 4294967295
  %v28 = vsel %vm20, %v26, 4294967295
  %vm29 = vcmp.eq.s32.totalorder %v13, 1
  %v30 = vsel %vm29, 1, 0
  %vm31 = vcmp.eq.s32.totalorder %v30, 1
  %32 = vset.pattern.permute.xlu0 1
  %33 = vperm.xlu0 %32, %v16
  %v34 = vpop.permute.xlu0 %33
  %35 = vset.pattern.permute.xlu0 1
  %36 = vperm.xlu0 %35, %v17
  %v37 = vpop.permute.xlu0 %36
  %v38 = vsel %vm31, %v34, %v27
  %v39 = vsel %vm31, %v37, %v28
  %vm40 = vcmp.eq.s32.totalorder %v13, 2
  %v41 = vsel %vm40, 1, 0
  %vm42 = vcmp.eq.s32.totalorder %v41, 1
  %43 = vset.pattern.permute.xlu0 2
  %44 = vperm.xlu0 %43, %v16
  %v45 = vpop.permute.xlu0 %44
  %46 = vset.pattern.permute.xlu0 2
  %47 = vperm.xlu0 %46, %v17
  %v48 = vpop.permute.xlu0 %47
  %v49 = vsel %vm42, %v45, %v38
  %v50 = vsel %vm42, %v48, %v39
  %vm51 = vcmp.eq.s32.totalorder %v13, 3
  %v52 = vsel %vm51, 1, 0
  %vm53 = vcmp.eq.s32.totalorder %v52, 1
  %54 = vset.pattern.permute.xlu0 3
  %55 = vperm.xlu0 %54, %v16
  %v56 = vpop.permute.xlu0 %55
  %57 = vset.pattern.permute.xlu0 3
  %58 = vperm.xlu0 %57, %v17
  %v59 = vpop.permute.xlu0 %58
  %v60 = vsel %vm53, %v56, %v49
  %v61 = vsel %vm53, %v59, %v50
  %vm62 = vcmp.ge.s32.totalorder %v60, 0
  %vm63 = vcmp.ge.s32.totalorder %v61, 0
  %64 = vrot.lane.b32.xlu0 %v14, 1
  %v65 = vpop.permute.xlu0 %64
  %66 = vrot.lane.b32.xlu0 %v15, 1
  %v67 = vpop.permute.xlu0 %66
  %68 = vrot.lane.b32.xlu0 %v14, 127
  %v69 = vpop.permute.xlu0 %68
  %70 = vrot.lane.b32.xlu0 %v15, 127
  %v71 = vpop.permute.xlu0 %70
  %72 = vrot.lane.b32.xlu0 %v12, 1
  %v73 = vpop.permute.xlu0 %72
  %v74 = vxor.u32 %v12, 1
  %vm75 = vcmp.eq.s32.totalorder %v73, %v74
  %v76 = vsel %vm75, 1, 0
  %v77 = vlaneseq
  %v78 = vshrl.u32 %v77, 7
  %v79 = vsub.s32 0, %v78
  %v80 = vrot.slane %v76, %v79
  %vm81 = vcmp.eq.s32.totalorder %v80, 1
  %v82 = vsel %vm81, %v65, %v69
  %v83 = vsel %vm81, %v67, %v71
  %v84 = vmax.f32 %v14, %v82
  %v85 = vmax.f32 %v15, %v83
  %86 = vrot.lane.b32.xlu0 %v84, 2
  %v87 = vpop.permute.xlu0 %86
  %88 = vrot.lane.b32.xlu0 %v85, 2
  %v89 = vpop.permute.xlu0 %88
  %90 = vrot.lane.b32.xlu0 %v84, 126
  %v91 = vpop.permute.xlu0 %90
  %92 = vrot.lane.b32.xlu0 %v85, 126
  %v93 = vpop.permute.xlu0 %92
  %94 = vrot.lane.b32.xlu0 %v12, 2
  %v95 = vpop.permute.xlu0 %94
  %v96 = vxor.u32 %v12, 2
  %vm97 = vcmp.eq.s32.totalorder %v95, %v96
  %v98 = vsel %vm97, 1, 0
  %v99 = vlaneseq
  %v100 = vshrl.u32 %v99, 7
  %v101 = vsub.s32 0, %v100
  %v102 = vrot.slane %v98, %v101
  %vm103 = vcmp.eq.s32.totalorder %v102, 1
  %v104 = vsel %vm103, %v87, %v91
  %v105 = vsel %vm103, %v89, %v93
  %v106 = vmax.f32 %v84, %v104
  %v107 = vmax.f32 %v85, %v105
  %108 = vrot.lane.b32.xlu0 %v106, 4
  %v109 = vpop.permute.xlu0 %108
  %110 = vrot.lane.b32.xlu0 %v107, 4
  %v111 = vpop.permute.xlu0 %110
  %112 = vrot.lane.b32.xlu0 %v106, 124
  %v113 = vpop.permute.xlu0 %112
  %114 = vrot.lane.b32.xlu0 %v107, 124
  %v115 = vpop.permute.xlu0 %114
  %116 = vrot.lane.b32.xlu0 %v12, 4
  %v117 = vpop.permute.xlu0 %116
  %v118 = vxor.u32 %v12, 4
  %vm119 = vcmp.eq.s32.totalorder %v117, %v118
  %v120 = vsel %vm119, 1, 0
  %v121 = vlaneseq
  %v122 = vshrl.u32 %v121, 7
  %v123 = vsub.s32 0, %v122
  %v124 = vrot.slane %v120, %v123
  %vm125 = vcmp.eq.s32.totalorder %v124, 1
  %v126 = vsel %vm125, %v109, %v113
  %v127 = vsel %vm125, %v111, %v115
  %v128 = vmax.f32 %v106, %v126
  %v129 = vmax.f32 %v107, %v127
  %130 = vrot.lane.b32.xlu0 %v128, 8
  %v131 = vpop.permute.xlu0 %130
  %132 = vrot.lane.b32.xlu0 %v129, 8
  %v133 = vpop.permute.xlu0 %132
  %134 = vrot.lane.b32.xlu0 %v128, 120
  %v135 = vpop.permute.xlu0 %134
  %136 = vrot.lane.b32.xlu0 %v129, 120
  %v137 = vpop.permute.xlu0 %136
  %138 = vrot.lane.b32.xlu0 %v12, 8
  %v139 = vpop.permute.xlu0 %138
  %v140 = vxor.u32 %v12, 8
  %vm141 = vcmp.eq.s32.totalorder %v139, %v140
  %v142 = vsel %vm141, 1, 0
  %v143 = vlaneseq
  %v144 = vshrl.u32 %v143, 7
  %v145 = vsub.s32 0, %v144
  %v146 = vrot.slane %v142, %v145
  %vm147 = vcmp.eq.s32.totalorder %v146, 1
  %v148 = vsel %vm147, %v131, %v135
  %v149 = vsel %vm147, %v133, %v137
  %v150 = vmax.f32 %v128, %v148
  %v151 = vmax.f32 %v129, %v149
  %152 = vrot.lane.b32.xlu0 %v150, 16
  %v153 = vpop.permute.xlu0 %152
  %154 = vrot.lane.b32.xlu0 %v151, 16
  %v155 = vpop.permute.xlu0 %154
  %156 = vrot.lane.b32.xlu0 %v150, 112
  %v157 = vpop.permute.xlu0 %156
  %158 = vrot.lane.b32.xlu0 %v151, 112
  %v159 = vpop.permute.xlu0 %158
  %160 = vrot.lane.b32.xlu0 %v12, 16
  %v161 = vpop.permute.xlu0 %160
  %v162 = vxor.u32 %v12, 16
  %vm163 = vcmp.eq.s32.totalorder %v161, %v162
  %v164 = vsel %vm163, 1, 0
  %v165 = vlaneseq
  %v166 = vshrl.u32 %v165, 7
  %v167 = vsub.s32 0, %v166
  %v168 = vrot.slane %v164, %v167
  %vm169 = vcmp.eq.s32.totalorder %v168, 1
  %v170 = vsel %vm169, %v153, %v157
  %v171 = vsel %vm169, %v155, %v159
  %v172 = vmax.f32 %v150, %v170
  %v173 = vmax.f32 %v151, %v171
  %v174 = vsub.f32 %v14, %v172
  %v175 = vsub.f32 %v15, %v173
  %v176 = vmul.f32 %v174, 1.442695
  %v177 = vpow.pop %v176
  %v178 = vmul.f32 %v175, 1.442695
  %v179 = vpow.pop %v178
  %180 = vrot.lane.b32.xlu0 %v177, 1
  %v181 = vpop.permute.xlu0 %180
  %182 = vrot.lane.b32.xlu0 %v179, 1
  %v183 = vpop.permute.xlu0 %182
  %184 = vrot.lane.b32.xlu0 %v177, 127
  %v185 = vpop.permute.xlu0 %184
  %186 = vrot.lane.b32.xlu0 %v179, 127
  %v187 = vpop.permute.xlu0 %186
  %v188 = vsel %vm81, %v181, %v185
  %v189 = vsel %vm81, %v183, %v187
  %v190 = vadd.f32 %v177, %v188
  %v191 = vadd.f32 %v179, %v189
  %192 = vrot.lane.b32.xlu0 %v190, 2
  %v193 = vpop.permute.xlu0 %192
  %194 = vrot.lane.b32.xlu0 %v191, 2
  %v195 = vpop.permute.xlu0 %194
  %196 = vrot.lane.b32.xlu0 %v190, 126
  %v197 = vpop.permute.xlu0 %196
  %198 = vrot.lane.b32.xlu0 %v191, 126
  %v199 = vpop.permute.xlu0 %198
  %v200 = vsel %vm103, %v193, %v197
  %v201 = vsel %vm103, %v195, %v199
  %v202 = vadd.f32 %v190, %v200
  %v203 = vadd.f32 %v191, %v201
  %204 = vrot.lane.b32.xlu0 %v202, 4
  %v205 = vpop.permute.xlu0 %204
  %206 = vrot.lane.b32.xlu0 %v203, 4
  %v207 = vpop.permute.xlu0 %206
  %208 = vrot.lane.b32.xlu0 %v202, 124
  %v209 = vpop.permute.xlu0 %208
  %210 = vrot.lane.b32.xlu0 %v203, 124
  %v211 = vpop.permute.xlu0 %210
  %v212 = vsel %vm125, %v205, %v209
  %v213 = vsel %vm125, %v207, %v211
  %v214 = vadd.f32 %v202, %v212
  %v215 = vadd.f32 %v203, %v213
  %216 = vrot.lane.b32.xlu0 %v214, 8
  %v217 = vpop.permute.xlu0 %216
  %218 = vrot.lane.b32.xlu0 %v215, 8
  %v219 = vpop.permute.xlu0 %218
  %220 = vrot.lane.b32.xlu0 %v214, 120
  %v221 = vpop.permute.xlu0 %220
  %222 = vrot.lane.b32.xlu0 %v215, 120
  %v223 = vpop.permute.xlu0 %222
  %v224 = vsel %vm147, %v217, %v221
  %v225 = vsel %vm147, %v219, %v223
  %v226 = vadd.f32 %v214, %v224
  %v227 = vadd.f32 %v215, %v225
  %228 = vrot.lane.b32.xlu0 %v226, 16
  %v229 = vpop.permute.xlu0 %228
  %230 = vrot.lane.b32.xlu0 %v227, 16
  %v231 = vpop.permute.xlu0 %230
  %232 = vrot.lane.b32.xlu0 %v226, 112
  %v233 = vpop.permute.xlu0 %232
  %234 = vrot.lane.b32.xlu0 %v227, 112
  %v235 = vpop.permute.xlu0 %234
  %v236 = vsel %vm169, %v229, %v233
  %v237 = vsel %vm169, %v231, %v235
  %v238 = vadd.f32 %v226, %v236
  %v239 = vadd.f32 %v227, %v237
  %vm240 = vcmp.eq.s32.totalorder %v12, %v60
  %vm241 = vcmp.eq.s32.totalorder %v12, %v61
  %v242 = vsel %vm240, %v174, 0.0
  %v243 = vsel %vm241, %v175, 0.0
  %244 = vrot.lane.b32.xlu0 %v242, 1
  %v245 = vpop.permute.xlu0 %244
  %246 = vrot.lane.b32.xlu0 %v243, 1
  %v247 = vpop.permute.xlu0 %246
  %248 = vrot.lane.b32.xlu0 %v242, 127
  %v249 = vpop.permute.xlu0 %248
  %250 = vrot.lane.b32.xlu0 %v243, 127
  %v251 = vpop.permute.xlu0 %250
  %v252 = vsel %vm81, %v245, %v249
  %v253 = vsel %vm81, %v247, %v251
  %v254 = vadd.f32 %v242, %v252
  %v255 = vadd.f32 %v243, %v253
  %256 = vrot.lane.b32.xlu0 %v254, 2
  %v257 = vpop.permute.xlu0 %256
  %258 = vrot.lane.b32.xlu0 %v255, 2
  %v259 = vpop.permute.xlu0 %258
  %260 = vrot.lane.b32.xlu0 %v254, 126
  %v261 = vpop.permute.xlu0 %260
  %262 = vrot.lane.b32.xlu0 %v255, 126
  %v263 = vpop.permute.xlu0 %262
  %v264 = vsel %vm103, %v257, %v261
  %v265 = vsel %vm103, %v259, %v263
  %v266 = vadd.f32 %v254, %v264
  %v267 = vadd.f32 %v255, %v265
  %268 = vrot.lane.b32.xlu0 %v266, 4
  %v269 = vpop.permute.xlu0 %268
  %270 = vrot.lane.b32.xlu0 %v267, 4
  %v271 = vpop.permute.xlu0 %270
  %272 = vrot.lane.b32.xlu0 %v266, 124
  %v273 = vpop.permute.xlu0 %272
  %274 = vrot.lane.b32.xlu0 %v267, 124
  %v275 = vpop.permute.xlu0 %274
  %v276 = vsel %vm125, %v269, %v273
  %v277 = vsel %vm125, %v271, %v275
  %v278 = vadd.f32 %v266, %v276
  %v279 = vadd.f32 %v267, %v277
  %280 = vrot.lane.b32.xlu0 %v278, 8
  %v281 = vpop.permute.xlu0 %280
  %282 = vrot.lane.b32.xlu0 %v279, 8
  %v283 = vpop.permute.xlu0 %282
  %284 = vrot.lane.b32.xlu0 %v278, 120
  %v285 = vpop.permute.xlu0 %284
  %286 = vrot.lane.b32.xlu0 %v279, 120
  %v287 = vpop.permute.xlu0 %286
  %v288 = vsel %vm147, %v281, %v285
  %v289 = vsel %vm147, %v283, %v287
  %v290 = vadd.f32 %v278, %v288
  %v291 = vadd.f32 %v279, %v289
  %292 = vrot.lane.b32.xlu0 %v290, 16
  %v293 = vpop.permute.xlu0 %292
  %294 = vrot.lane.b32.xlu0 %v291, 16
  %v295 = vpop.permute.xlu0 %294
  %296 = vrot.lane.b32.xlu0 %v290, 112
  %v297 = vpop.permute.xlu0 %296
  %298 = vrot.lane.b32.xlu0 %v291, 112
  %v299 = vpop.permute.xlu0 %298
  %v300 = vsel %vm169, %v293, %v297
  %v301 = vsel %vm169, %v295, %v299
  %v302 = vadd.f32 %v290, %v300
  %v303 = vadd.f32 %v291, %v301
  %v304 = vlog2.pop %v238
  %v305 = vmul.f32 %v304, 0.6931472
  %v306 = vlog2.pop %v239
  %v307 = vmul.f32 %v306, 0.6931472
  %v308 = vsub.f32 %v302, %v305
  %v309 = vsub.f32 %v303, %v307
  %v310 = vmul.f32 %v308, 1.442695
  %v311 = vpow.pop %v310
  %v312 = vmul.f32 %v309, 1.442695
  %v313 = vpow.pop %v312
  %v314 = vsub.f32 1.0, %v311
  %v315 = vsub.f32 1.0, %v313
  %v316 = vmul.f32 %v314, %v314
  %v317 = vmul.f32 %v315, %v315
  %v318 = vmul.f32 %v316, %v308
  %v319 = vmul.f32 %v317, %v309
  %v320 = vsub.f32 0.0, %v318
  %v321 = vsub.f32 0.0, %v319
  %v322 = vsel %vm62, %v320, 0.0
  %v323 = vsel %vm63, %v321, 0.0
  %324 = vrot.lane.b32.xlu0 %v322, 31
  %v325 = vpop.permute.xlu0 %324
  %326 = vrot.lane.b32.xlu0 %v323, 31
  %v327 = vpop.permute.xlu0 %326
  %328 = vrot.lane.b32.xlu0 %v322, 97
  %v329 = vpop.permute.xlu0 %328
  %330 = vrot.lane.b32.xlu0 %v323, 97
  %v331 = vpop.permute.xlu0 %330
  %332 = vrot.lane.b32.xlu0 %v12, 31
  %v333 = vpop.permute.xlu0 %332
  %v334 = vadd.s32 %v12, 31
  %v335 = vand.u32 %v334, 127
  %vm336 = vcmp.eq.s32.totalorder %v333, %v335
  %v337 = vsel %vm336, 1, 0
  %v338 = vlaneseq
  %v339 = vshrl.u32 %v338, 7
  %v340 = vsub.s32 0, %v339
  %v341 = vrot.slane %v337, %v340
  %vm342 = vcmp.eq.s32.totalorder %v341, 1
  %v343 = vsel %vm342, %v325, %v329
  %v344 = vsel %vm342, %v327, %v331
  %vm345 = vcmp.eq.s32.totalorder %v12, 1
  %v346 = vsel %vm345, 1, 0
  %vm347 = vcmp.eq.s32.totalorder %v346, 1
  %v348 = vsel %vm347, %v343, %v322
  %v349 = vsel %vm347, %v344, %v323
  %350 = vrot.lane.b32.xlu0 %v322, 62
  %v351 = vpop.permute.xlu0 %350
  %352 = vrot.lane.b32.xlu0 %v323, 62
  %v353 = vpop.permute.xlu0 %352
  %354 = vrot.lane.b32.xlu0 %v322, 66
  %v355 = vpop.permute.xlu0 %354
  %356 = vrot.lane.b32.xlu0 %v323, 66
  %v357 = vpop.permute.xlu0 %356
  %358 = vrot.lane.b32.xlu0 %v12, 62
  %v359 = vpop.permute.xlu0 %358
  %v360 = vadd.s32 %v12, 62
  %v361 = vand.u32 %v360, 127
  %vm362 = vcmp.eq.s32.totalorder %v359, %v361
  %v363 = vsel %vm362, 1, 0
  %v364 = vlaneseq
  %v365 = vshrl.u32 %v364, 7
  %v366 = vsub.s32 0, %v365
  %v367 = vrot.slane %v363, %v366
  %vm368 = vcmp.eq.s32.totalorder %v367, 1
  %v369 = vsel %vm368, %v351, %v355
  %v370 = vsel %vm368, %v353, %v357
  %vm371 = vcmp.eq.s32.totalorder %v12, 2
  %v372 = vsel %vm371, 1, 0
  %vm373 = vcmp.eq.s32.totalorder %v372, 1
  %v374 = vsel %vm373, %v369, %v348
  %v375 = vsel %vm373, %v370, %v349
  %376 = vrot.lane.b32.xlu0 %v322, 93
  %v377 = vpop.permute.xlu0 %376
  %378 = vrot.lane.b32.xlu0 %v323, 93
  %v379 = vpop.permute.xlu0 %378
  %380 = vrot.lane.b32.xlu0 %v322, 35
  %v381 = vpop.permute.xlu0 %380
  %382 = vrot.lane.b32.xlu0 %v323, 35
  %v383 = vpop.permute.xlu0 %382
  %384 = vrot.lane.b32.xlu0 %v12, 93
  %v385 = vpop.permute.xlu0 %384
  %v386 = vadd.s32 %v12, 93
  %v387 = vand.u32 %v386, 127
  %vm388 = vcmp.eq.s32.totalorder %v385, %v387
  %v389 = vsel %vm388, 1, 0
  %v390 = vlaneseq
  %v391 = vshrl.u32 %v390, 7
  %v392 = vsub.s32 0, %v391
  %v393 = vrot.slane %v389, %v392
  %vm394 = vcmp.eq.s32.totalorder %v393, 1
  %v395 = vsel %vm394, %v377, %v381
  %v396 = vsel %vm394, %v379, %v383
  %vm397 = vcmp.eq.s32.totalorder %v12, 3
  %v398 = vsel %vm397, 1, 0
  %vm399 = vcmp.eq.s32.totalorder %v398, 1
  %v400 = vsel %vm399, %v395, %v374
  %v401 = vsel %vm399, %v396, %v375
  %vm402 = vcmask 31744
  %403 = vst.msk [vmem:[%s2] sm:$0xff] %vm402, %v400
  %404 = vst.msk [vmem:[%s2 + $0x8] sm:$0xff] %vm402, %v401
  // Predicated region
  $region10: #{tpu_custom_call.1} parent=0 // pred_check
    _
  $region11: #{tpu_custom_call.1} parent=0 // pred_check_branch
    %406 = sbr.rel (0) target = $region13
  $region12: #{tpu_custom_call.1} parent=0 // pred_region
    _
  $region13: #{tpu_custom_call.1} parent=0 // pred_fallthru
    _
  // Predicated region
  $region14: #{tpu_custom_call.1} parent=0 // pred_check
    _
  $region15: #{tpu_custom_call.1} parent=0 // pred_check_branch
    %408 = sbr.rel (0) target = $region17
  $region16: #{tpu_custom_call.1} parent=0 // pred_region
    _
  $region17: #{tpu_custom_call.1} parent=0 // pred_fallthru
    _

</llo_original>
